<compile_context>
chip_gen: v6e
topology: v6e:2x2x1
jax: 0.10.0
libtpu: 0.0.40
codegen_flags: <defaults>
</compile_context>

<pallas_src>
import functools

import jax
import jax.numpy as jnp
from jax.experimental import pallas as pl
from jax.experimental.pallas import tpu as pltpu


def _round_up(a, b):
    return ((a + b - 1) // b) * b


def _choose_tile_n(n, tile_n_req, x_dim, y_dim, two_h, vmem_budget_bytes):
    """Pick a batch tile sized against the lane-padded VMEM footprint."""
    lane = 128
    xw = _round_up(x_dim, lane)
    yw = _round_up(y_dim, lane)
    hw = _round_up(two_h, lane)
    zw = _round_up(2 * y_dim, lane)
    # Streamed inputs are double-buffered f32; temporaries (h, z, mu/logvar/
    # inv_var/delta, bf16 casts) are a conservative per-row scratch estimate.
    stream_bytes = 2 * 4 * (xw + 2 * yw)
    scratch_bytes = 4 * (hw + zw + 4 * yw) + 2 * (xw + hw)
    per_row = stream_bytes + scratch_bytes
    cap = max(16, ((vmem_budget_bytes // per_row) // 16) * 16)

    tile_n = max(16, min(_round_up(tile_n_req, 16), cap, _round_up(n, 16)))
    num_tiles = pl.cdiv(n, tile_n)
    # v7x megacore: prefer an even tile count (>1) so both TensorCores get
    # balanced work under dimension_semantics=("parallel",).
    if num_tiles > 1 and num_tiles % 2 == 1:
        tile_n = max(16, _round_up(pl.cdiv(n, num_tiles + 1), 16))
        num_tiles = pl.cdiv(n, tile_n)
    return tile_n, num_tiles


def _club_kernel(x_ref, y_ref, yp_ref, w1_ref, b1_ref, w2_ref, b2_ref, out_ref,
                 *, n_valid, y_dim, tile_n, ragged):
    # Cast to bf16 in-kernel (VPU) -> no extra HBM pre-pass over x in glue.
    x = x_ref[...].astype(jnp.bfloat16)   # (tile_n, x_dim)
    y = y_ref[...]                        # (tile_n, y_dim) f32
    yp = yp_ref[...]                      # (tile_n, y_dim) f32 (y[perm] tile)

    # Fused first layer: [h_mu | h_lv] in one MXU pass, f32 accumulation.
    h = jnp.dot(x, w1_ref[...], preferred_element_type=jnp.float32) + b1_ref[...]
    h = jnp.maximum(h, 0.0)

    # Fused (block-diagonal) second layer: [mu | pre_tanh] in one MXU pass.
    z = jnp.dot(h.astype(jnp.bfloat16), w2_ref[...],
                preferred_element_type=jnp.float32) + b2_ref[...]
    mu = z[:, :y_dim]
    inv_var = jnp.exp(-jnp.tanh(z[:, y_dim:]))

    # positive - negative = ((mu - yp)^2 - (mu - y)^2) * inv_var
    #                     = (y - yp) * (2*mu - y - yp) * inv_var
    delta = (y - yp) * (2.0 * mu - y - yp) * inv_var

    if ragged:
        # Only emitted when the grid does not divide the batch: zero out rows
        # that fall past n_valid in the (partial) boundary block.  jnp.where is
        # a select, so garbage/NaN from OOB rows never reaches the sum.
        row = (jax.lax.broadcasted_iota(jnp.int32, (tile_n, 1), 0)
               + pl.program_id(0) * tile_n)
        delta = jnp.where(row < n_valid, delta, 0.0)

    # Sublane-only reduction; store the (1, y_dim) partial into the first row
    # of the (1, 8, 128) output block (masked sub-slice store).  The remaining
    # lanes/sublanes of the block are never read by the glue.
    partial = jnp.sum(delta, axis=0, keepdims=True)          # (1, y_dim)
    out_ref[0:1, 0:1, 0:y_dim] = partial[None]                # (1, 1, y_dim)


def club_sample_forward(params, x_samples, y_samples, perm, *, tile_n=4096,
                        vmem_budget_bytes=20 * 1024 * 1024):
    """CLUBSample.forward: mu/logvar MLPs + CLUB upper bound, tiled over batch."""
    n, x_dim = x_samples.shape
    y_dim = y_samples.shape[1]

    # torch.randperm gather (glue, not the hot path).
    # TODO(synk): in-kernel gather via scalar-prefetched perm + pl.ANY y ref.
    y_perm = y_samples[perm]

    # Fuse the twin MLPs (tiny one-time work, done outside the kernel).
    h_half = params["w2_mu"].shape[0]
    two_h = 2 * h_half
    w1_f = jnp.concatenate([params["w1_mu"], params["w1_lv"]], axis=1)   # (x_dim, 2h)
    b1_f = jnp.concatenate([params["b1_mu"], params["b1_lv"]], axis=1)   # (1, 2h)
    w2_f = jnp.zeros((two_h, 2 * y_dim), jnp.float32)
    w2_f = w2_f.at[:h_half, :y_dim].set(params["w2_mu"])                 # block-diag
    w2_f = w2_f.at[h_half:, y_dim:].set(params["w2_lv"])
    b2_f = jnp.concatenate([params["b2_mu"], params["b2_lv"]], axis=1)   # (1, 2*y_dim)
    w1_f = w1_f.astype(jnp.bfloat16)   # MXU operands; biases stay f32
    w2_f = w2_f.astype(jnp.bfloat16)

    tile_n, num_tiles = _choose_tile_n(n, tile_n, x_dim, y_dim, two_h,
                                       vmem_budget_bytes)
    ragged = (n % tile_n) != 0

    kernel = functools.partial(_club_kernel, n_valid=n, y_dim=y_dim,
                               tile_n=tile_n, ragged=ragged)

    partials = pl.pallas_call(
        kernel,
        out_shape=jax.ShapeDtypeStruct((num_tiles, 8, 128), jnp.float32),
        grid=(num_tiles,),
        in_specs=[
            pl.BlockSpec((tile_n, x_dim), lambda i: (i, 0)),      # x        (pipelined)
            pl.BlockSpec((tile_n, y_dim), lambda i: (i, 0)),      # y        (pipelined)
            pl.BlockSpec((tile_n, y_dim), lambda i: (i, 0)),      # y[perm]  (pipelined)
            pl.BlockSpec((x_dim, two_h), lambda i: (0, 0)),       # fused W1 (resident)
            pl.BlockSpec((1, two_h), lambda i: (0, 0)),           # fused b1 (resident)
            pl.BlockSpec((two_h, 2 * y_dim), lambda i: (0, 0)),   # fused W2 (resident)
            pl.BlockSpec((1, 2 * y_dim), lambda i: (0, 0)),       # fused b2 (resident)
        ],
        out_specs=pl.BlockSpec((1, 8, 128), lambda i: (i, 0, 0)),
        compiler_params=pltpu.CompilerParams(
            dimension_semantics=("parallel",),       # megacore sharding on v7x
            vmem_limit_bytes=32 * 1024 * 1024,       # fits all gens' physical VMEM
        ),
    )(x_samples, y_samples, y_perm, w1_f, b1_f, w2_f, b2_f)

    # Tiny cross-tile reduction + finalization (true N, not padded N).
    return jnp.sum(partials[:, 0, :y_dim]) / (2.0 * n)


def init_params(key, x_dim, y_dim, hidden_size):
    h = hidden_size // 2
    ks = jax.random.split(key, 8)
    scale = 0.1
    return {
        "w1_mu": scale * jax.random.normal(ks[0], (x_dim, h), jnp.float32),
        "b1_mu": scale * jax.random.normal(ks[1], (1, h), jnp.float32),
        "w2_mu": scale * jax.random.normal(ks[2], (h, y_dim), jnp.float32),
        "b2_mu": scale * jax.random.normal(ks[3], (1, y_dim), jnp.float32),
        "w1_lv": scale * jax.random.normal(ks[4], (x_dim, h), jnp.float32),
        "b1_lv": scale * jax.random.normal(ks[5], (1, h), jnp.float32),
        "w2_lv": scale * jax.random.normal(ks[6], (h, y_dim), jnp.float32),
        "b2_lv": scale * jax.random.normal(ks[7], (1, y_dim), jnp.float32),
    }


def reference_forward_f32(params, x, y, perm):
    """Pure-f32 reference matching the PyTorch module exactly."""
    h_mu = jnp.maximum(x @ params["w1_mu"] + params["b1_mu"], 0.0)
    mu = h_mu @ params["w2_mu"] + params["b2_mu"]
    h_lv = jnp.maximum(x @ params["w1_lv"] + params["b1_lv"], 0.0)
    logvar = jnp.tanh(h_lv @ params["w2_lv"] + params["b2_lv"])
    inv_var = jnp.exp(-logvar)
    pos = -((mu - y) ** 2) * inv_var
    neg = -((mu - y[perm]) ** 2) * inv_var
    return jnp.mean(jnp.sum(pos - neg, axis=-1)) / 2.0


def reference_forward_matched(params, x, y, perm):
    """Reference with the same numerics as the kernel (bf16 MXU operands, f32 accum)."""
    bf = jnp.bfloat16
    xb = x.astype(bf)
    h_mu = jnp.maximum(
        jnp.dot(xb, params["w1_mu"].astype(bf), preferred_element_type=jnp.float32)
        + params["b1_mu"], 0.0)
    mu = jnp.dot(h_mu.astype(bf), params["w2_mu"].astype(bf),
                 preferred_element_type=jnp.float32) + params["b2_mu"]
    h_lv = jnp.maximum(
        jnp.dot(xb, params["w1_lv"].astype(bf), preferred_element_type=jnp.float32)
        + params["b1_lv"], 0.0)
    logvar = jnp.tanh(
        jnp.dot(h_lv.astype(bf), params["w2_lv"].astype(bf),
                preferred_element_type=jnp.float32) + params["b2_lv"])
    inv_var = jnp.exp(-logvar)
    pos = -((mu - y) ** 2) * inv_var
    neg = -((mu - y[perm]) ** 2) * inv_var
    return jnp.mean(jnp.sum(pos - neg, axis=-1)) / 2.0


if __name__ == "__main__":
    # Small shapes consistent with the module.  The default call exercises the
    # large-tile / single-ragged-block path; the tile_n=64 call exercises
    # multi-tile pipelining, the even-tile-count heuristic and last-tile masking.
    batch, x_dim, y_dim, hidden_size = 200, 32, 16, 32

    key = jax.random.PRNGKey(0)
    k_param, k_x, k_y, k_perm = jax.random.split(key, 4)

    params = init_params(k_param, x_dim, y_dim, hidden_size)
    x = jax.random.normal(k_x, (batch, x_dim), jnp.float32)
    y = jax.random.normal(k_y, (batch, y_dim), jnp.float32)
    perm = jax.random.permutation(k_perm, batch)  # deterministic stand-in for randperm

    out_default = jax.block_until_ready(club_sample_forward(params, x, y, perm))
    out_multitile = jax.block_until_ready(
        club_sample_forward(params, x, y, perm, tile_n=64))

    ref_matched = reference_forward_matched(params, x, y, perm)
    ref_f32 = reference_forward_f32(params, x, y, perm)

    for out in (out_default, out_multitile):
        assert jnp.allclose(out, ref_matched, atol=1e-3, rtol=1e-3), (out, ref_matched)
        assert jnp.allclose(out, ref_f32, atol=5e-2, rtol=5e-2), (out, ref_f32)

    print("KERNEL_OK")
</pallas_src>

<mosaic_0001>
module attributes {stable_mosaic.version = 11 : i64} {
  func.func @_club_kernel(%arg0: i32, %arg1: memref<208x32xf32, #tpu.memory_space<vmem>>, %arg2: memref<208x16xf32, #tpu.memory_space<vmem>>, %arg3: memref<208x16xf32, #tpu.memory_space<vmem>>, %arg4: memref<32x32xbf16, #tpu.memory_space<vmem>>, %arg5: memref<1x32xf32, #tpu.memory_space<vmem>>, %arg6: memref<32x32xbf16, #tpu.memory_space<vmem>>, %arg7: memref<1x32xf32, #tpu.memory_space<vmem>>, %arg8: memref<1x8x128xf32, #tpu.memory_space<vmem>>) attributes {dimension_semantics = [#tpu.dimension_semantics<parallel>], iteration_bounds = array<i64: 1>, scalar_prefetch = 0 : i64, scratch_operands = 0 : i64, tpu.core_type = #tpu.core_type<tc>, window_params = [{transform_indices = @transform_0, window_bounds = array<i64: 208, 32>}, {transform_indices = @transform_1, window_bounds = array<i64: 208, 16>}, {transform_indices = @transform_2, window_bounds = array<i64: 208, 16>}, {pipeline_mode = #tpu.pipeline_mode<synchronous>, transform_indices = @transform_3, window_bounds = array<i64: 32, 32>}, {pipeline_mode = #tpu.pipeline_mode<synchronous>, transform_indices = @transform_4, window_bounds = array<i64: 1, 32>}, {pipeline_mode = #tpu.pipeline_mode<synchronous>, transform_indices = @transform_5, window_bounds = array<i64: 32, 32>}, {pipeline_mode = #tpu.pipeline_mode<synchronous>, transform_indices = @transform_6, window_bounds = array<i64: 1, 32>}, {transform_indices = @transform_7, window_bounds = array<i64: 1, 8, 128>}]} {
    %c0 = arith.constant 0 : index
    %c0_0 = arith.constant 0 : index
    %0 = vector.load %arg1[%c0, %c0_0] : memref<208x32xf32, #tpu.memory_space<vmem>>, vector<208x32xf32>
    %1 = arith.truncf %0 : vector<208x32xf32> to vector<208x32xbf16>
    %c0_1 = arith.constant 0 : index
    %c0_2 = arith.constant 0 : index
    %2 = vector.load %arg2[%c0_1, %c0_2] : memref<208x16xf32, #tpu.memory_space<vmem>>, vector<208x16xf32>
    %c0_3 = arith.constant 0 : index
    %c0_4 = arith.constant 0 : index
    %3 = vector.load %arg3[%c0_3, %c0_4] : memref<208x16xf32, #tpu.memory_space<vmem>>, vector<208x16xf32>
    %c0_5 = arith.constant 0 : index
    %c0_6 = arith.constant 0 : index
    %4 = vector.load %arg4[%c0_5, %c0_6] : memref<32x32xbf16, #tpu.memory_space<vmem>>, vector<32x32xbf16>
    %cst = arith.constant dense<0.000000e+00> : vector<208x32xf32>
    %5 = tpu.matmul %1, %4, %cst {dimension_numbers = #tpu.dot_dimension_numbers<[1], [0], [0], [1], [0, 0, 1, 1], [], []>} : vector<208x32xbf16>, vector<32x32xbf16>, vector<208x32xf32> -> vector<208x32xf32>
    %c0_7 = arith.constant 0 : index
    %c0_8 = arith.constant 0 : index
    %6 = vector.load %arg5[%c0_7, %c0_8] : memref<1x32xf32, #tpu.memory_space<vmem>>, vector<1x32xf32>
    %7 = vector.broadcast %6 : vector<1x32xf32> to vector<208x32xf32>
    %8 = arith.addf %5, %7 : vector<208x32xf32>
    %cst_9 = arith.constant 0.000000e+00 : f32
    %9 = vector.broadcast %cst_9 : f32 to vector<208x32xf32>
    %10 = arith.maximumf %8, %9 : vector<208x32xf32>
    %11 = arith.truncf %10 : vector<208x32xf32> to vector<208x32xbf16>
    %c0_10 = arith.constant 0 : index
    %c0_11 = arith.constant 0 : index
    %12 = vector.load %arg6[%c0_10, %c0_11] : memref<32x32xbf16, #tpu.memory_space<vmem>>, vector<32x32xbf16>
    %cst_12 = arith.constant dense<0.000000e+00> : vector<208x32xf32>
    %13 = tpu.matmul %11, %12, %cst_12 {dimension_numbers = #tpu.dot_dimension_numbers<[1], [0], [0], [1], [0, 0, 1, 1], [], []>} : vector<208x32xbf16>, vector<32x32xbf16>, vector<208x32xf32> -> vector<208x32xf32>
    %c0_13 = arith.constant 0 : index
    %c0_14 = arith.constant 0 : index
    %14 = vector.load %arg7[%c0_13, %c0_14] : memref<1x32xf32, #tpu.memory_space<vmem>>, vector<1x32xf32>
    %15 = vector.broadcast %14 : vector<1x32xf32> to vector<208x32xf32>
    %16 = arith.addf %13, %15 : vector<208x32xf32>
    %17 = vector.extract_strided_slice %16 {offsets = [0, 0], sizes = [208, 16], strides = [1, 1]} : vector<208x32xf32> to vector<208x16xf32>
    %18 = vector.extract_strided_slice %16 {offsets = [0, 16], sizes = [208, 16], strides = [1, 1]} : vector<208x32xf32> to vector<208x16xf32>
    %19 = math.tanh %18 : vector<208x16xf32>
    %cst_15 = arith.constant 0.000000e+00 : f32
    %20 = vector.broadcast %cst_15 : f32 to vector<208x16xf32>
    %21 = arith.subf %20, %19 : vector<208x16xf32>
    %22 = math.exp %21 : vector<208x16xf32>
    %23 = arith.subf %2, %3 : vector<208x16xf32>
    %cst_16 = arith.constant 2.000000e+00 : f32
    %24 = vector.broadcast %cst_16 : f32 to vector<208x16xf32>
    %25 = arith.mulf %24, %17 : vector<208x16xf32>
    %26 = arith.subf %25, %2 : vector<208x16xf32>
    %27 = arith.subf %26, %3 : vector<208x16xf32>
    %28 = arith.mulf %23, %27 : vector<208x16xf32>
    %29 = arith.mulf %28, %22 : vector<208x16xf32>
    %30 = tpu.iota {dimensions = array<i32: 0>} : vector<208x1xi32>
    %c208_i32 = arith.constant 208 : i32
    %31 = arith.muli %arg0, %c208_i32 : i32
    %32 = vector.broadcast %31 : i32 to vector<208x1xi32>
    %33 = arith.addi %30, %32 : vector<208x1xi32>
    %c200_i32 = arith.constant 200 : i32
    %34 = vector.broadcast %c200_i32 : i32 to vector<208x1xi32>
    %35 = arith.cmpi slt, %33, %34 : vector<208x1xi32>
    %cst_17 = arith.constant 0.000000e+00 : f32
    %36 = vector.shape_cast %35 : vector<208x1xi1> to vector<208x1xi1>
    %37 = vector.broadcast %36 : vector<208x1xi1> to vector<208x16xi1>
    %38 = vector.broadcast %cst_17 : f32 to vector<208x16xf32>
    %39 = arith.select %37, %29, %38 : vector<208x16xi1>, vector<208x16xf32>
    %cst_18 = arith.constant dense<0.000000e+00> : vector<16xf32>
    %40 = vector.multi_reduction <add>, %39, %cst_18 [0] : vector<208x16xf32> to vector<16xf32>
    %41 = vector.shape_cast %40 : vector<16xf32> to vector<1x16xf32>
    %42 = vector.shape_cast %41 : vector<1x16xf32> to vector<1x1x16xf32>
    %c0_19 = arith.constant 0 : index
    %c0_20 = arith.constant 0 : index
    %c0_21 = arith.constant 0 : index
    %43 = vector.load %arg8[%c0_19, %c0_20, %c0_21] : memref<1x8x128xf32, #tpu.memory_space<vmem>>, vector<1x1x16xf32>
    tpu.vector_store %arg8[%c0_19, %c0_20, %c0_21], %42 {strides = array<i32>} : memref<1x8x128xf32, #tpu.memory_space<vmem>>, vector<1x1x16xf32>,
    return
  }
  func.func @transform_0(%arg0: i32) -> (i32, i32) {
    %c0_i32 = arith.constant 0 : i32
    %c0_i32_0 = arith.constant 0 : i32
    return %arg0, %c0_i32 : i32, i32
  }
  func.func @transform_1(%arg0: i32) -> (i32, i32) {
    %c0_i32 = arith.constant 0 : i32
    %c0_i32_0 = arith.constant 0 : i32
    return %arg0, %c0_i32 : i32, i32
  }
  func.func @transform_2(%arg0: i32) -> (i32, i32) {
    %c0_i32 = arith.constant 0 : i32
    %c0_i32_0 = arith.constant 0 : i32
    return %arg0, %c0_i32 : i32, i32
  }
  func.func @transform_3(%arg0: i32) -> (i32, i32) {
    %c0_i32 = arith.constant 0 : i32
    %c0_i32_0 = arith.constant 0 : i32
    %c0_i32_1 = arith.constant 0 : i32
    return %c0_i32, %c0_i32_0 : i32, i32
  }
  func.func @transform_4(%arg0: i32) -> (i32, i32) {
    %c0_i32 = arith.constant 0 : i32
    %c0_i32_0 = arith.constant 0 : i32
    %c0_i32_1 = arith.constant 0 : i32
    return %c0_i32, %c0_i32_0 : i32, i32
  }
  func.func @transform_5(%arg0: i32) -> (i32, i32) {
    %c0_i32 = arith.constant 0 : i32
    %c0_i32_0 = arith.constant 0 : i32
    %c0_i32_1 = arith.constant 0 : i32
    return %c0_i32, %c0_i32_0 : i32, i32
  }
  func.func @transform_6(%arg0: i32) -> (i32, i32) {
    %c0_i32 = arith.constant 0 : i32
    %c0_i32_0 = arith.constant 0 : i32
    %c0_i32_1 = arith.constant 0 : i32
    return %c0_i32, %c0_i32_0 : i32, i32
  }
  func.func @transform_7(%arg0: i32) -> (i32, i32, i32) {
    %c0_i32 = arith.constant 0 : i32
    %c0_i32_0 = arith.constant 0 : i32
    %c0_i32_1 = arith.constant 0 : i32
    return %arg0, %c0_i32, %c0_i32_0 : i32, i32, i32
  }
}

</mosaic_0001>

<llo_original>
// kernel: tpu_custom_call.1
$region0: #{tpu_custom_call.1}
  #allocation0 [shape = 'u32[]', space=smem, size = 0x4, offset = 0x4, fixed_abs, tag = 'smem constant byte address 0x4 - core index']
  #allocation1 [shape = 'u32[144,128]{1,0:T(1,128)}', space=vmem, size = 0x12000, scoped, tag = 'internal scratch']
  %s0 = inlined_call_operand.vmem [shape: f32[200,32], index: 0, kind: input, shape index: {}]
  %s1 = inlined_call_operand.vmem [shape: f32[200,16], index: 1, kind: input, shape index: {}]
  %s2 = inlined_call_operand.vmem [shape: f32[200,16], index: 2, kind: input, shape index: {}]
  %s3 = inlined_call_operand.vmem [shape: bf16[32,32], index: 3, kind: input, shape index: {}]
  %s4 = inlined_call_operand.vmem [shape: f32[1,32], index: 4, kind: input, shape index: {}]
  %s5 = inlined_call_operand.vmem [shape: bf16[32,32], index: 5, kind: input, shape index: {}]
  %s6 = inlined_call_operand.vmem [shape: f32[1,32], index: 6, kind: input, shape index: {}]
  %s7 = inlined_call_operand.hbm [shape: f32[1,8,128], index: 7, kind: output, shape index: {}]
  %s8 = sld [smem:[#allocation0]]
  $region38: #{tpu_custom_call.1} parent=0
    _
  %s10 = ssub.s32 1, %s8
  %s11 = scalar_select 0, %s10, %s8
  $region1: #{tpu_custom_call.1} parent=0
    #allocation2 [shape = 'u8[4096]{0}', space=vmem, size = 0x1000, scoped, tag = 'output window, operand 0, single buffered']
    #allocation3 [shape = 's32[1]{0}', space=sflag, size = 0x4, scoped, tag = 'scoped memory for tpu_custom_call.1']
    %12 = vsyncpa [#allocation3], 0
    // Predicated region
    $region2: #{tpu_custom_call.1} parent=1 // pred_check
      _
    $region3: #{tpu_custom_call.1} parent=1 // pred_check_branch
      %14 = sbr.rel (0) target = $region5
    $region4: #{tpu_custom_call.1} parent=1 // pred_region
      _
    $region5: #{tpu_custom_call.1} parent=1 // pred_fallthru
      _
    // Predicated region
    $region6: #{tpu_custom_call.1} parent=1 // pred_check
      _
    $region7: #{tpu_custom_call.1} parent=1 // pred_check_branch
      %16 = sbr.rel (0) target = $region9
    $region8: #{tpu_custom_call.1} parent=1 // pred_region
      _
    $region9: #{tpu_custom_call.1} parent=1 // pred_fallthru
      _
    // Predicated region
    $region10: #{tpu_custom_call.1} parent=1 // pred_check
      _
    $region11: #{tpu_custom_call.1} parent=1 // pred_check_branch
      %18 = sbr.rel (0) target = $region13
    $region12: #{tpu_custom_call.1} parent=1 // pred_region
      _
    $region13: #{tpu_custom_call.1} parent=1 // pred_fallthru
      _
    // Predicated region
    $region14: #{tpu_custom_call.1} parent=1 // pred_check
      _
    $region15: #{tpu_custom_call.1} parent=1 // pred_check_branch
      %20 = sbr.rel (0) target = $region17
    $region16: #{tpu_custom_call.1} parent=1 // pred_region
      _
    $region17: #{tpu_custom_call.1} parent=1 // pred_fallthru
      _
    // Predicated region
    $region18: #{tpu_custom_call.1} parent=1 // pred_check
      _
    $region19: #{tpu_custom_call.1} parent=1 // pred_check_branch
      %22 = sbr.rel (0) target = $region21
    $region20: #{tpu_custom_call.1} parent=1 // pred_region
      _
    $region21: #{tpu_custom_call.1} parent=1 // pred_fallthru
      _
    // Predicated region
    $region22: #{tpu_custom_call.1} parent=1 // pred_check
      _
    $region23: #{tpu_custom_call.1} parent=1 // pred_check_branch
      %24 = sbr.rel (0) target = $region25
    $region24: #{tpu_custom_call.1} parent=1 // pred_region
      _
    $region25: #{tpu_custom_call.1} parent=1 // pred_fallthru
      _
    // Predicated region
    $region26: #{tpu_custom_call.1} parent=1 // pred_check
      _
    $region27: #{tpu_custom_call.1} parent=1 // pred_check_branch
      %26 = sbr.rel (0) target = $region29
    $region28: #{tpu_custom_call.1} parent=1 // pred_region
      _
    $region29: #{tpu_custom_call.1} parent=1 // pred_fallthru
      _
    %v28 = vld [vmem:[%s0] sm:$0xff]
    %v29 = vld [vmem:[%s0 + $0x8] sm:$0xff]
    %v30 = vld [vmem:[%s0 + $0x10] sm:$0xff]
    %v31 = vld [vmem:[%s0 + $0x18] sm:$0xff]
    %v32 = vld [vmem:[%s0 + $0x20] sm:$0xff]
    %v33 = vld [vmem:[%s0 + $0x28] sm:$0xff]
    %v34 = vld [vmem:[%s0 + $0x30] sm:$0xff]
    %v35 = vld [vmem:[%s0 + $0x38] sm:$0xff]
    %v36 = vld [vmem:[%s0 + $0x40] sm:$0xff]
    %v37 = vld [vmem:[%s0 + $0x48] sm:$0xff]
    %v38 = vld [vmem:[%s0 + $0x50] sm:$0xff]
    %v39 = vld [vmem:[%s0 + $0x58] sm:$0xff]
    %v40 = vld [vmem:[%s0 + $0x60] sm:$0xff]
    %v41 = vld [vmem:[%s0 + $0x68] sm:$0xff]
    %v42 = vld [vmem:[%s0 + $0x70] sm:$0xff]
    %v43 = vld [vmem:[%s0 + $0x78] sm:$0xff]
    %v44 = vld [vmem:[%s0 + $0x80] sm:$0xff]
    %v45 = vld [vmem:[%s0 + $0x88] sm:$0xff]
    %v46 = vld [vmem:[%s0 + $0x90] sm:$0xff]
    %v47 = vld [vmem:[%s0 + $0x98] sm:$0xff]
    %v48 = vld [vmem:[%s0 + $0xa0] sm:$0xff]
    %v49 = vld [vmem:[%s0 + $0xa8] sm:$0xff]
    %v50 = vld [vmem:[%s0 + $0xb0] sm:$0xff]
    %v51 = vld [vmem:[%s0 + $0xb8] sm:$0xff]
    %v52 = vld [vmem:[%s0 + $0xc0] sm:$0xff]
    %v53 = vld [vmem:[%s0 + $0xc8] sm:$0xff]
    %v54 = vpack.c.bf16 %v29, %v28
    %v55 = vpack.c.bf16 %v31, %v30
    %v56 = vpack.c.bf16 %v33, %v32
    %v57 = vpack.c.bf16 %v35, %v34
    %v58 = vpack.c.bf16 %v37, %v36
    %v59 = vpack.c.bf16 %v39, %v38
    %v60 = vpack.c.bf16 %v41, %v40
    %v61 = vpack.c.bf16 %v43, %v42
    %v62 = vpack.c.bf16 %v45, %v44
    %v63 = vpack.c.bf16 %v47, %v46
    %v64 = vpack.c.bf16 %v49, %v48
    %v65 = vpack.c.bf16 %v51, %v50
    %v66 = vpack.c.bf16 %v53, %v52
    %v67 = vld [vmem:[%s1] sm:$0xff]
    %v68 = vld [vmem:[%s1 + $0x8] sm:$0xff]
    %v69 = vld [vmem:[%s1 + $0x10] sm:$0xff]
    %v70 = vld [vmem:[%s1 + $0x18] sm:$0xff]
    %v71 = vld [vmem:[%s1 + $0x20] sm:$0xff]
    %v72 = vld [vmem:[%s1 + $0x28] sm:$0xff]
    %v73 = vld [vmem:[%s1 + $0x30] sm:$0xff]
    %v74 = vld [vmem:[%s1 + $0x38] sm:$0xff]
    %v75 = vld [vmem:[%s1 + $0x40] sm:$0xff]
    %v76 = vld [vmem:[%s1 + $0x48] sm:$0xff]
    %v77 = vld [vmem:[%s1 + $0x50] sm:$0xff]
    %v78 = vld [vmem:[%s1 + $0x58] sm:$0xff]
    %v79 = vld [vmem:[%s1 + $0x60] sm:$0xff]
    %v80 = vld [vmem:[%s1 + $0x68] sm:$0xff]
    %v81 = vld [vmem:[%s1 + $0x70] sm:$0xff]
    %v82 = vld [vmem:[%s1 + $0x78] sm:$0xff]
    %v83 = vld [vmem:[%s1 + $0x80] sm:$0xff]
    %v84 = vld [vmem:[%s1 + $0x88] sm:$0xff]
    %v85 = vld [vmem:[%s1 + $0x90] sm:$0xff]
    %v86 = vld [vmem:[%s1 + $0x98] sm:$0xff]
    %v87 = vld [vmem:[%s1 + $0xa0] sm:$0xff]
    %v88 = vld [vmem:[%s1 + $0xa8] sm:$0xff]
    %v89 = vld [vmem:[%s1 + $0xb0] sm:$0xff]
    %v90 = vld [vmem:[%s1 + $0xb8] sm:$0xff]
    %v91 = vld [vmem:[%s1 + $0xc0] sm:$0xff]
    %v92 = vld [vmem:[%s1 + $0xc8] sm:$0xff]
    %v93 = vld [vmem:[%s2] sm:$0xff]
    %v94 = vld [vmem:[%s2 + $0x8] sm:$0xff]
    %v95 = vld [vmem:[%s2 + $0x10] sm:$0xff]
    %v96 = vld [vmem:[%s2 + $0x18] sm:$0xff]
    %v97 = vld [vmem:[%s2 + $0x20] sm:$0xff]
    %v98 = vld [vmem:[%s2 + $0x28] sm:$0xff]
    %v99 = vld [vmem:[%s2 + $0x30] sm:$0xff]
    %v100 = vld [vmem:[%s2 + $0x38] sm:$0xff]
    %v101 = vld [vmem:[%s2 + $0x40] sm:$0xff]
    %v102 = vld [vmem:[%s2 + $0x48] sm:$0xff]
    %v103 = vld [vmem:[%s2 + $0x50] sm:$0xff]
    %v104 = vld [vmem:[%s2 + $0x58] sm:$0xff]
    %v105 = vld [vmem:[%s2 + $0x60] sm:$0xff]
    %v106 = vld [vmem:[%s2 + $0x68] sm:$0xff]
    %v107 = vld [vmem:[%s2 + $0x70] sm:$0xff]
    %v108 = vld [vmem:[%s2 + $0x78] sm:$0xff]
    %v109 = vld [vmem:[%s2 + $0x80] sm:$0xff]
    %v110 = vld [vmem:[%s2 + $0x88] sm:$0xff]
    %v111 = vld [vmem:[%s2 + $0x90] sm:$0xff]
    %v112 = vld [vmem:[%s2 + $0x98] sm:$0xff]
    %v113 = vld [vmem:[%s2 + $0xa0] sm:$0xff]
    %v114 = vld [vmem:[%s2 + $0xa8] sm:$0xff]
    %v115 = vld [vmem:[%s2 + $0xb0] sm:$0xff]
    %v116 = vld [vmem:[%s2 + $0xb8] sm:$0xff]
    %v117 = vld [vmem:[%s2 + $0xc0] sm:$0xff]
    %v118 = vld [vmem:[%s2 + $0xc8] sm:$0xff]
    %v119 = vld [vmem:[%s3] sm:$0xf]
    %v120 = vld [vmem:[%s3 + $0x4] sm:$0xf]
    %v121 = vld [vmem:[%s3 + $0x8] sm:$0xf]
    %v122 = vld [vmem:[%s3 + $0xc] sm:$0xf]
    %v123 = vld [vmem:[%s4] sm:$0x1]
    %v125 = vlaneseq
    %v126 = vshrl.u32 %v125, 7
    %v127 = vsub.s32 0, %v126
    %v128 = vrot.slane %v123, %v127
    %v134 = vunpack.c.l.b16 %v119
    %v135 = vunpack.c.l.b16 %v120
    %v136 = vunpack.c.l.b16 %v121
    %v137 = vunpack.c.l.b16 %v122
    %v138 = vpack.c.b16 %v135, %v134
    %v139 = vpack.c.b16 %v137, %v136
    %vm142 = vcmask 261120
    %v144 = vsel %vm142, %v54, 0
    %v147 = vsel %vm142, %v55, 0
    %v150 = vsel %vm142, %v56, 0
    %v153 = vsel %vm142, %v57, 0
    %v156 = vsel %vm142, %v58, 0
    %v159 = vsel %vm142, %v59, 0
    %v162 = vsel %vm142, %v60, 0
    %v165 = vsel %vm142, %v61, 0
    %v168 = vsel %vm142, %v62, 0
    %v171 = vsel %vm142, %v63, 0
    %v174 = vsel %vm142, %v64, 0
    %v177 = vsel %vm142, %v65, 0
    %v180 = vsel %vm142, %v66, 0
    %182 = vmatprep.subr.bf16.mxu0 0
    %183 = vmatpush1.bf16.msra.mxu0 0
    %184 = vmatprep.subr.bf16.mxu0 0
    %185 = vmatpush1.bf16.msra.mxu0 0
    %186 = vmatprep.subr.bf16.mxu0 0
    %187 = vmatpush1.bf16.msra.mxu0 0
    %188 = vmatprep.subr.bf16.mxu0 0
    %189 = vmatpush1.bf16.msra.mxu0 0
    %190 = vmatprep.subr.bf16.mxu0 0
    %191 = vmatpush1.bf16.msra.mxu0 0
    %192 = vmatprep.subr.bf16.mxu0 0
    %193 = vmatpush1.bf16.msra.mxu0 0
    %194 = vmatprep.subr.bf16.mxu0 0
    %195 = vmatpush1.bf16.msra.mxu0 %v139
    %196 = vmatprep.subr.bf16.mxu0 0
    %197 = vmatpush1.bf16.msra.mxu0 %v138
    %198 = vmatprep.subr.bf16.mxu0 0
    %199 = vmatpush2.bf16.msra.mxu0 0
    %200 = vmatprep.subr.bf16.mxu0 0
    %201 = vmatpush2.bf16.msra.mxu0 0
    %202 = vmatprep.subr.bf16.mxu0 0
    %203 = vmatpush2.bf16.msra.mxu0 0
    %204 = vmatprep.subr.bf16.mxu0 0
    %205 = vmatpush2.bf16.msra.mxu0 0
    %206 = vmatprep.subr.bf16.mxu0 0
    %207 = vmatpush2.bf16.msra.mxu0 0
    %208 = vmatprep.subr.bf16.mxu0 0
    %209 = vmatpush2.bf16.msra.mxu0 0
    %210 = vmatprep.subr.bf16.mxu0 0
    %211 = vmatpush2.bf16.msra.mxu0 0
    %212 = vmatprep.subr.bf16.mxu0 0
    %213 = vmatpush2.bf16.msra.mxu0 0
    %214 = vmatprep.mubr.bf16.mxu0 0
    %215 = vmatmul.mubr.bf16.gmra.mxu0 %v144
    %v216 = vpop.f32.mrf.mxu0
    %v217 = vadd.f32 %v128, %v216
    %v218 = vpop.f32.mrf.mxu0
    %v219 = vpop.f32.mrf.mxu0
    %v220 = vadd.f32 %v128, %v219
    %v221 = vpop.f32.mrf.mxu0
    %222 = vmatprep.mubr.bf16.mxu0 0
    %223 = vmatmul.mubr.bf16.gmra.mxu0 %v147
    %v224 = vpop.f32.mrf.mxu0
    %v225 = vadd.f32 %v128, %v224
    %v226 = vpop.f32.mrf.mxu0
    %v227 = vpop.f32.mrf.mxu0
    %v228 = vadd.f32 %v128, %v227
    %v229 = vpop.f32.mrf.mxu0
    %230 = vmatprep.mubr.bf16.mxu0 0
    %231 = vmatmul.mubr.bf16.gmra.mxu0 %v150
    %v232 = vpop.f32.mrf.mxu0
    %v233 = vadd.f32 %v128, %v232
    %v234 = vpop.f32.mrf.mxu0
    %v235 = vpop.f32.mrf.mxu0
    %v236 = vadd.f32 %v128, %v235
    %v237 = vpop.f32.mrf.mxu0
    %238 = vmatprep.mubr.bf16.mxu0 0
    %239 = vmatmul.mubr.bf16.gmra.mxu0 %v153
    %v240 = vpop.f32.mrf.mxu0
    %v241 = vadd.f32 %v128, %v240
    %v242 = vpop.f32.mrf.mxu0
    %v243 = vpop.f32.mrf.mxu0
    %v244 = vadd.f32 %v128, %v243
    %v245 = vpop.f32.mrf.mxu0
    %246 = vmatprep.mubr.bf16.mxu0 0
    %247 = vmatmul.mubr.bf16.gmra.mxu0 %v156
    %v248 = vpop.f32.mrf.mxu0
    %v249 = vadd.f32 %v128, %v248
    %v250 = vpop.f32.mrf.mxu0
    %v251 = vpop.f32.mrf.mxu0
    %v252 = vadd.f32 %v128, %v251
    %v253 = vpop.f32.mrf.mxu0
    %254 = vmatprep.mubr.bf16.mxu0 0
    %255 = vmatmul.mubr.bf16.gmra.mxu0 %v159
    %v256 = vpop.f32.mrf.mxu0
    %v257 = vadd.f32 %v128, %v256
    %v258 = vpop.f32.mrf.mxu0
    %v259 = vpop.f32.mrf.mxu0
    %v260 = vadd.f32 %v128, %v259
    %v261 = vpop.f32.mrf.mxu0
    %262 = vmatprep.mubr.bf16.mxu0 0
    %263 = vmatmul.mubr.bf16.gmra.mxu0 %v162
    %v264 = vpop.f32.mrf.mxu0
    %v265 = vadd.f32 %v128, %v264
    %v266 = vpop.f32.mrf.mxu0
    %v267 = vpop.f32.mrf.mxu0
    %v268 = vadd.f32 %v128, %v267
    %v269 = vpop.f32.mrf.mxu0
    %270 = vmatprep.mubr.bf16.mxu0 0
    %271 = vmatmul.mubr.bf16.gmra.mxu0 %v165
    %v272 = vpop.f32.mrf.mxu0
    %v273 = vadd.f32 %v128, %v272
    %v274 = vpop.f32.mrf.mxu0
    %v275 = vpop.f32.mrf.mxu0
    %v276 = vadd.f32 %v128, %v275
    %v277 = vpop.f32.mrf.mxu0
    %278 = vmatprep.mubr.bf16.mxu0 0
    %279 = vmatmul.mubr.bf16.gmra.mxu0 %v168
    %v280 = vpop.f32.mrf.mxu0
    %v281 = vadd.f32 %v128, %v280
    %v282 = vpop.f32.mrf.mxu0
    %v283 = vpop.f32.mrf.mxu0
    %v284 = vadd.f32 %v128, %v283
    %v285 = vpop.f32.mrf.mxu0
    %286 = vmatprep.mubr.bf16.mxu0 0
    %287 = vmatmul.mubr.bf16.gmra.mxu0 %v171
    %v288 = vpop.f32.mrf.mxu0
    %v289 = vadd.f32 %v128, %v288
    %v290 = vpop.f32.mrf.mxu0
    %v291 = vpop.f32.mrf.mxu0
    %v292 = vadd.f32 %v128, %v291
    %v293 = vpop.f32.mrf.mxu0
    %294 = vmatprep.mubr.bf16.mxu0 0
    %295 = vmatmul.mubr.bf16.gmra.mxu0 %v174
    %v296 = vpop.f32.mrf.mxu0
    %v297 = vadd.f32 %v128, %v296
    %v298 = vpop.f32.mrf.mxu0
    %v299 = vpop.f32.mrf.mxu0
    %v300 = vadd.f32 %v128, %v299
    %v301 = vpop.f32.mrf.mxu0
    %302 = vmatprep.mubr.bf16.mxu0 0
    %303 = vmatmul.mubr.bf16.gmra.mxu0 %v177
    %v304 = vpop.f32.mrf.mxu0
    %v305 = vadd.f32 %v128, %v304
    %v306 = vpop.f32.mrf.mxu0
    %v307 = vpop.f32.mrf.mxu0
    %v308 = vadd.f32 %v128, %v307
    %v309 = vpop.f32.mrf.mxu0
    %310 = vmatprep.mubr.bf16.mxu0 0
    %311 = vmatmul.mubr.bf16.gmra.mxu0 %v180
    %v312 = vpop.f32.mrf.mxu0
    %v313 = vadd.f32 %v128, %v312
    %v314 = vpop.f32.mrf.mxu0
    %v315 = vpop.f32.mrf.mxu0
    %v316 = vadd.f32 %v128, %v315
    %v317 = vpop.f32.mrf.mxu0
    %318 = vdwg.mxu0
    %v319 = vmax.f32 %v217, 0.0
    %v320 = vmax.f32 %v220, 0.0
    %v321 = vmax.f32 %v225, 0.0
    %v322 = vmax.f32 %v228, 0.0
    %v323 = vmax.f32 %v233, 0.0
    %v324 = vmax.f32 %v236, 0.0
    %v325 = vmax.f32 %v241, 0.0
    %v326 = vmax.f32 %v244, 0.0
    %v327 = vmax.f32 %v249, 0.0
    %v328 = vmax.f32 %v252, 0.0
    %v329 = vmax.f32 %v257, 0.0
    %v330 = vmax.f32 %v260, 0.0
    %v331 = vmax.f32 %v265, 0.0
    %v332 = vmax.f32 %v268, 0.0
    %v333 = vmax.f32 %v273, 0.0
    %v334 = vmax.f32 %v276, 0.0
    %v335 = vmax.f32 %v281, 0.0
    %v336 = vmax.f32 %v284, 0.0
    %v337 = vmax.f32 %v289, 0.0
    %v338 = vmax.f32 %v292, 0.0
    %v339 = vmax.f32 %v297, 0.0
    %v340 = vmax.f32 %v300, 0.0
    %v341 = vmax.f32 %v305, 0.0
    %v342 = vmax.f32 %v308, 0.0
    %v343 = vmax.f32 %v313, 0.0
    %v344 = vmax.f32 %v316, 0.0
    %v345 = vpack.c.bf16 %v320, %v319
    %v346 = vpack.c.bf16 %v322, %v321
    %v347 = vpack.c.bf16 %v324, %v323
    %v348 = vpack.c.bf16 %v326, %v325
    %v349 = vpack.c.bf16 %v328, %v327
    %v350 = vpack.c.bf16 %v330, %v329
    %v351 = vpack.c.bf16 %v332, %v331
    %v352 = vpack.c.bf16 %v334, %v333
    %v353 = vpack.c.bf16 %v336, %v335
    %v354 = vpack.c.bf16 %v338, %v337
    %v355 = vpack.c.bf16 %v340, %v339
    %v356 = vpack.c.bf16 %v342, %v341
    %v357 = vpack.c.bf16 %v344, %v343
    %v358 = vld [vmem:[%s5] sm:$0xf]
    %v359 = vld [vmem:[%s5 + $0x4] sm:$0xf]
    %v360 = vld [vmem:[%s5 + $0x8] sm:$0xf]
    %v361 = vld [vmem:[%s5 + $0xc] sm:$0xf]
    %v362 = vld [vmem:[%s6] sm:$0x1]
    %v364 = vlaneseq
    %v365 = vshrl.u32 %v364, 7
    %v366 = vsub.s32 0, %v365
    %v367 = vrot.slane %v362, %v366
    %v373 = vunpack.c.l.b16 %v358
    %v374 = vunpack.c.l.b16 %v359
    %v375 = vunpack.c.l.b16 %v360
    %v376 = vunpack.c.l.b16 %v361
    %v377 = vpack.c.b16 %v374, %v373
    %v378 = vpack.c.b16 %v376, %v375
    %v382 = vsel %vm142, %v345, 0
    %v385 = vsel %vm142, %v346, 0
    %v388 = vsel %vm142, %v347, 0
    %v391 = vsel %vm142, %v348, 0
    %v394 = vsel %vm142, %v349, 0
    %v397 = vsel %vm142, %v350, 0
    %v400 = vsel %vm142, %v351, 0
    %v403 = vsel %vm142, %v352, 0
    %v406 = vsel %vm142, %v353, 0
    %v409 = vsel %vm142, %v354, 0
    %v412 = vsel %vm142, %v355, 0
    %v415 = vsel %vm142, %v356, 0
    %v418 = vsel %vm142, %v357, 0
    %420 = vmatprep.subr.bf16.mxu0 0
    %421 = vmatpush1.bf16.msra.mxu0 0
    %422 = vmatprep.subr.bf16.mxu0 0
    %423 = vmatpush1.bf16.msra.mxu0 0
    %424 = vmatprep.subr.bf16.mxu0 0
    %425 = vmatpush1.bf16.msra.mxu0 0
    %426 = vmatprep.subr.bf16.mxu0 0
    %427 = vmatpush1.bf16.msra.mxu0 0
    %428 = vmatprep.subr.bf16.mxu0 0
    %429 = vmatpush1.bf16.msra.mxu0 0
    %430 = vmatprep.subr.bf16.mxu0 0
    %431 = vmatpush1.bf16.msra.mxu0 0
    %432 = vmatprep.subr.bf16.mxu0 0
    %433 = vmatpush1.bf16.msra.mxu0 %v378
    %434 = vmatprep.subr.bf16.mxu0 0
    %435 = vmatpush1.bf16.msra.mxu0 %v377
    %436 = vmatprep.subr.bf16.mxu0 0
    %437 = vmatpush2.bf16.msra.mxu0 0
    %438 = vmatprep.subr.bf16.mxu0 0
    %439 = vmatpush2.bf16.msra.mxu0 0
    %440 = vmatprep.subr.bf16.mxu0 0
    %441 = vmatpush2.bf16.msra.mxu0 0
    %442 = vmatprep.subr.bf16.mxu0 0
    %443 = vmatpush2.bf16.msra.mxu0 0
    %444 = vmatprep.subr.bf16.mxu0 0
    %445 = vmatpush2.bf16.msra.mxu0 0
    %446 = vmatprep.subr.bf16.mxu0 0
    %447 = vmatpush2.bf16.msra.mxu0 0
    %448 = vmatprep.subr.bf16.mxu0 0
    %449 = vmatpush2.bf16.msra.mxu0 0
    %450 = vmatprep.subr.bf16.mxu0 0
    %451 = vmatpush2.bf16.msra.mxu0 0
    %452 = vmatprep.mubr.bf16.mxu0 0
    %453 = vmatmul.mubr.bf16.gmra.mxu0 %v382
    %v454 = vpop.f32.mrf.mxu0
    %v455 = vadd.f32 %v367, %v454
    %v456 = vpop.f32.mrf.mxu0
    %v457 = vpop.f32.mrf.mxu0
    %v458 = vadd.f32 %v367, %v457
    %v459 = vpop.f32.mrf.mxu0
    %460 = vmatprep.mubr.bf16.mxu0 0
    %461 = vmatmul.mubr.bf16.gmra.mxu0 %v385
    %v462 = vpop.f32.mrf.mxu0
    %v463 = vadd.f32 %v367, %v462
    %v464 = vpop.f32.mrf.mxu0
    %v465 = vpop.f32.mrf.mxu0
    %v466 = vadd.f32 %v367, %v465
    %v467 = vpop.f32.mrf.mxu0
    %468 = vmatprep.mubr.bf16.mxu0 0
    %469 = vmatmul.mubr.bf16.gmra.mxu0 %v388
    %v470 = vpop.f32.mrf.mxu0
    %v471 = vadd.f32 %v367, %v470
    %v472 = vpop.f32.mrf.mxu0
    %v473 = vpop.f32.mrf.mxu0
    %v474 = vadd.f32 %v367, %v473
    %v475 = vpop.f32.mrf.mxu0
    %476 = vmatprep.mubr.bf16.mxu0 0
    %477 = vmatmul.mubr.bf16.gmra.mxu0 %v391
    %v478 = vpop.f32.mrf.mxu0
    %v479 = vadd.f32 %v367, %v478
    %v480 = vpop.f32.mrf.mxu0
    %v481 = vpop.f32.mrf.mxu0
    %v482 = vadd.f32 %v367, %v481
    %v483 = vpop.f32.mrf.mxu0
    %484 = vmatprep.mubr.bf16.mxu0 0
    %485 = vmatmul.mubr.bf16.gmra.mxu0 %v394
    %v486 = vpop.f32.mrf.mxu0
    %v487 = vadd.f32 %v367, %v486
    %v488 = vpop.f32.mrf.mxu0
    %v489 = vpop.f32.mrf.mxu0
    %v490 = vadd.f32 %v367, %v489
    %v491 = vpop.f32.mrf.mxu0
    %492 = vmatprep.mubr.bf16.mxu0 0
    %493 = vmatmul.mubr.bf16.gmra.mxu0 %v397
    %v494 = vpop.f32.mrf.mxu0
    %v495 = vadd.f32 %v367, %v494
    %v496 = vpop.f32.mrf.mxu0
    %v497 = vpop.f32.mrf.mxu0
    %v498 = vadd.f32 %v367, %v497
    %v499 = vpop.f32.mrf.mxu0
    %500 = vmatprep.mubr.bf16.mxu0 0
    %501 = vmatmul.mubr.bf16.gmra.mxu0 %v400
    %v502 = vpop.f32.mrf.mxu0
    %v503 = vadd.f32 %v367, %v502
    %v504 = vpop.f32.mrf.mxu0
    %v505 = vpop.f32.mrf.mxu0
    %v506 = vadd.f32 %v367, %v505
    %v507 = vpop.f32.mrf.mxu0
    %508 = vmatprep.mubr.bf16.mxu0 0
    %509 = vmatmul.mubr.bf16.gmra.mxu0 %v403
    %v510 = vpop.f32.mrf.mxu0
    %v511 = vadd.f32 %v367, %v510
    %v512 = vpop.f32.mrf.mxu0
    %v513 = vpop.f32.mrf.mxu0
    %v514 = vadd.f32 %v367, %v513
    %v515 = vpop.f32.mrf.mxu0
    %516 = vmatprep.mubr.bf16.mxu0 0
    %517 = vmatmul.mubr.bf16.gmra.mxu0 %v406
    %v518 = vpop.f32.mrf.mxu0
    %v519 = vadd.f32 %v367, %v518
    %v520 = vpop.f32.mrf.mxu0
    %v521 = vpop.f32.mrf.mxu0
    %v522 = vadd.f32 %v367, %v521
    %v523 = vpop.f32.mrf.mxu0
    %524 = vmatprep.mubr.bf16.mxu0 0
    %525 = vmatmul.mubr.bf16.gmra.mxu0 %v409
    %v526 = vpop.f32.mrf.mxu0
    %v527 = vadd.f32 %v367, %v526
    %v528 = vpop.f32.mrf.mxu0
    %v529 = vpop.f32.mrf.mxu0
    %v530 = vadd.f32 %v367, %v529
    %v531 = vpop.f32.mrf.mxu0
    %532 = vmatprep.mubr.bf16.mxu0 0
    %533 = vmatmul.mubr.bf16.gmra.mxu0 %v412
    %v534 = vpop.f32.mrf.mxu0
    %v535 = vadd.f32 %v367, %v534
    %v536 = vpop.f32.mrf.mxu0
    %v537 = vpop.f32.mrf.mxu0
    %v538 = vadd.f32 %v367, %v537
    %v539 = vpop.f32.mrf.mxu0
    %540 = vmatprep.mubr.bf16.mxu0 0
    %541 = vmatmul.mubr.bf16.gmra.mxu0 %v415
    %v542 = vpop.f32.mrf.mxu0
    %v543 = vadd.f32 %v367, %v542
    %v544 = vpop.f32.mrf.mxu0
    %v545 = vpop.f32.mrf.mxu0
    %v546 = vadd.f32 %v367, %v545
    %v547 = vpop.f32.mrf.mxu0
    %548 = vmatprep.mubr.bf16.mxu0 0
    %549 = vmatmul.mubr.bf16.gmra.mxu0 %v418
    %v550 = vpop.f32.mrf.mxu0
    %v551 = vadd.f32 %v367, %v550
    %v552 = vpop.f32.mrf.mxu0
    %v553 = vpop.f32.mrf.mxu0
    %v554 = vadd.f32 %v367, %v553
    %v555 = vpop.f32.mrf.mxu0
    %556 = vdwg.mxu0
    %v557 = vtanh.pop %v455
    %v558 = vtanh.pop %v458
    %v559 = vtanh.pop %v463
    %v560 = vtanh.pop %v466
    %v561 = vtanh.pop %v471
    %v562 = vtanh.pop %v474
    %v563 = vtanh.pop %v479
    %v564 = vtanh.pop %v482
    %v565 = vtanh.pop %v487
    %v566 = vtanh.pop %v490
    %v567 = vtanh.pop %v495
    %v568 = vtanh.pop %v498
    %v569 = vtanh.pop %v503
    %v570 = vtanh.pop %v506
    %v571 = vtanh.pop %v511
    %v572 = vtanh.pop %v514
    %v573 = vtanh.pop %v519
    %v574 = vtanh.pop %v522
    %v575 = vtanh.pop %v527
    %v576 = vtanh.pop %v530
    %v577 = vtanh.pop %v535
    %v578 = vtanh.pop %v538
    %v579 = vtanh.pop %v543
    %v580 = vtanh.pop %v546
    %v581 = vtanh.pop %v551
    %v582 = vtanh.pop %v554
    %v583 = vsub.f32 0.0, %v557
    %v584 = vsub.f32 0.0, %v558
    %v585 = vsub.f32 0.0, %v559
    %v586 = vsub.f32 0.0, %v560
    %v587 = vsub.f32 0.0, %v561
    %v588 = vsub.f32 0.0, %v562
    %v589 = vsub.f32 0.0, %v563
    %v590 = vsub.f32 0.0, %v564
    %v591 = vsub.f32 0.0, %v565
    %v592 = vsub.f32 0.0, %v566
    %v593 = vsub.f32 0.0, %v567
    %v594 = vsub.f32 0.0, %v568
    %v595 = vsub.f32 0.0, %v569
    %v596 = vsub.f32 0.0, %v570
    %v597 = vsub.f32 0.0, %v571
    %v598 = vsub.f32 0.0, %v572
    %v599 = vsub.f32 0.0, %v573
    %v600 = vsub.f32 0.0, %v574
    %v601 = vsub.f32 0.0, %v575
    %v602 = vsub.f32 0.0, %v576
    %v603 = vsub.f32 0.0, %v577
    %v604 = vsub.f32 0.0, %v578
    %v605 = vsub.f32 0.0, %v579
    %v606 = vsub.f32 0.0, %v580
    %v607 = vsub.f32 0.0, %v581
    %v608 = vsub.f32 0.0, %v582
    %v609 = vmul.f32 %v583, 1.442695
    %v610 = vpow.pop %v609
    %v611 = vmul.f32 %v584, 1.442695
    %v612 = vpow.pop %v611
    %v613 = vmul.f32 %v585, 1.442695
    %v614 = vpow.pop %v613
    %v615 = vmul.f32 %v586, 1.442695
    %v616 = vpow.pop %v615
    %v617 = vmul.f32 %v587, 1.442695
    %v618 = vpow.pop %v617
    %v619 = vmul.f32 %v588, 1.442695
    %v620 = vpow.pop %v619
    %v621 = vmul.f32 %v589, 1.442695
    %v622 = vpow.pop %v621
    %v623 = vmul.f32 %v590, 1.442695
    %v624 = vpow.pop %v623
    %v625 = vmul.f32 %v591, 1.442695
    %v626 = vpow.pop %v625
    %v627 = vmul.f32 %v592, 1.442695
    %v628 = vpow.pop %v627
    %v629 = vmul.f32 %v593, 1.442695
    %v630 = vpow.pop %v629
    %v631 = vmul.f32 %v594, 1.442695
    %v632 = vpow.pop %v631
    %v633 = vmul.f32 %v595, 1.442695
    %v634 = vpow.pop %v633
    %v635 = vmul.f32 %v596, 1.442695
    %v636 = vpow.pop %v635
    %v637 = vmul.f32 %v597, 1.442695
    %v638 = vpow.pop %v637
    %v639 = vmul.f32 %v598, 1.442695
    %v640 = vpow.pop %v639
    %v641 = vmul.f32 %v599, 1.442695
    %v642 = vpow.pop %v641
    %v643 = vmul.f32 %v600, 1.442695
    %v644 = vpow.pop %v643
    %v645 = vmul.f32 %v601, 1.442695
    %v646 = vpow.pop %v645
    %v647 = vmul.f32 %v602, 1.442695
    %v648 = vpow.pop %v647
    %v649 = vmul.f32 %v603, 1.442695
    %v650 = vpow.pop %v649
    %v651 = vmul.f32 %v604, 1.442695
    %v652 = vpow.pop %v651
    %v653 = vmul.f32 %v605, 1.442695
    %v654 = vpow.pop %v653
    %v655 = vmul.f32 %v606, 1.442695
    %v656 = vpow.pop %v655
    %v657 = vmul.f32 %v607, 1.442695
    %v658 = vpow.pop %v657
    %v659 = vmul.f32 %v608, 1.442695
    %v660 = vpow.pop %v659
    %v661 = vsub.f32 %v67, %v93
    %v662 = vsub.f32 %v68, %v94
    %v663 = vsub.f32 %v69, %v95
    %v664 = vsub.f32 %v70, %v96
    %v665 = vsub.f32 %v71, %v97
    %v666 = vsub.f32 %v72, %v98
    %v667 = vsub.f32 %v73, %v99
    %v668 = vsub.f32 %v74, %v100
    %v669 = vsub.f32 %v75, %v101
    %v670 = vsub.f32 %v76, %v102
    %v671 = vsub.f32 %v77, %v103
    %v672 = vsub.f32 %v78, %v104
    %v673 = vsub.f32 %v79, %v105
    %v674 = vsub.f32 %v80, %v106
    %v675 = vsub.f32 %v81, %v107
    %v676 = vsub.f32 %v82, %v108
    %v677 = vsub.f32 %v83, %v109
    %v678 = vsub.f32 %v84, %v110
    %v679 = vsub.f32 %v85, %v111
    %v680 = vsub.f32 %v86, %v112
    %v681 = vsub.f32 %v87, %v113
    %v682 = vsub.f32 %v88, %v114
    %v683 = vsub.f32 %v89, %v115
    %v684 = vsub.f32 %v90, %v116
    %v685 = vsub.f32 %v91, %v117
    %v686 = vsub.f32 %v92, %v118
    %v687 = vmul.f32 %v455, 2.0
    %v688 = vmul.f32 %v458, 2.0
    %v689 = vmul.f32 %v463, 2.0
    %v690 = vmul.f32 %v466, 2.0
    %v691 = vmul.f32 %v471, 2.0
    %v692 = vmul.f32 %v474, 2.0
    %v693 = vmul.f32 %v479, 2.0
    %v694 = vmul.f32 %v482, 2.0
    %v695 = vmul.f32 %v487, 2.0
    %v696 = vmul.f32 %v490, 2.0
    %v697 = vmul.f32 %v495, 2.0
    %v698 = vmul.f32 %v498, 2.0
    %v699 = vmul.f32 %v503, 2.0
    %v700 = vmul.f32 %v506, 2.0
    %v701 = vmul.f32 %v511, 2.0
    %v702 = vmul.f32 %v514, 2.0
    %v703 = vmul.f32 %v519, 2.0
    %v704 = vmul.f32 %v522, 2.0
    %v705 = vmul.f32 %v527, 2.0
    %v706 = vmul.f32 %v530, 2.0
    %v707 = vmul.f32 %v535, 2.0
    %v708 = vmul.f32 %v538, 2.0
    %v709 = vmul.f32 %v543, 2.0
    %v710 = vmul.f32 %v546, 2.0
    %v711 = vmul.f32 %v551, 2.0
    %v712 = vmul.f32 %v554, 2.0
    %v713 = vsub.f32 %v687, %v67
    %v714 = vsub.f32 %v688, %v68
    %v715 = vsub.f32 %v689, %v69
    %v716 = vsub.f32 %v690, %v70
    %v717 = vsub.f32 %v691, %v71
    %v718 = vsub.f32 %v692, %v72
    %v719 = vsub.f32 %v693, %v73
    %v720 = vsub.f32 %v694, %v74
    %v721 = vsub.f32 %v695, %v75
    %v722 = vsub.f32 %v696, %v76
    %v723 = vsub.f32 %v697, %v77
    %v724 = vsub.f32 %v698, %v78
    %v725 = vsub.f32 %v699, %v79
    %v726 = vsub.f32 %v700, %v80
    %v727 = vsub.f32 %v701, %v81
    %v728 = vsub.f32 %v702, %v82
    %v729 = vsub.f32 %v703, %v83
    %v730 = vsub.f32 %v704, %v84
    %v731 = vsub.f32 %v705, %v85
    %v732 = vsub.f32 %v706, %v86
    %v733 = vsub.f32 %v707, %v87
    %v734 = vsub.f32 %v708, %v88
    %v735 = vsub.f32 %v709, %v89
    %v736 = vsub.f32 %v710, %v90
    %v737 = vsub.f32 %v711, %v91
    %v738 = vsub.f32 %v712, %v92
    %v739 = vsub.f32 %v713, %v93
    %v740 = vsub.f32 %v714, %v94
    %v741 = vsub.f32 %v715, %v95
    %v742 = vsub.f32 %v716, %v96
    %v743 = vsub.f32 %v717, %v97
    %v744 = vsub.f32 %v718, %v98
    %v745 = vsub.f32 %v719, %v99
    %v746 = vsub.f32 %v720, %v100
    %v747 = vsub.f32 %v721, %v101
    %v748 = vsub.f32 %v722, %v102
    %v749 = vsub.f32 %v723, %v103
    %v750 = vsub.f32 %v724, %v104
    %v751 = vsub.f32 %v725, %v105
    %v752 = vsub.f32 %v726, %v106
    %v753 = vsub.f32 %v727, %v107
    %v754 = vsub.f32 %v728, %v108
    %v755 = vsub.f32 %v729, %v109
    %v756 = vsub.f32 %v730, %v110
    %v757 = vsub.f32 %v731, %v111
    %v758 = vsub.f32 %v732, %v112
    %v759 = vsub.f32 %v733, %v113
    %v760 = vsub.f32 %v734, %v114
    %v761 = vsub.f32 %v735, %v115
    %v762 = vsub.f32 %v736, %v116
    %v763 = vsub.f32 %v737, %v117
    %v764 = vsub.f32 %v738, %v118
    %v765 = vmul.f32 %v661, %v739
    %v766 = vmul.f32 %v662, %v740
    %v767 = vmul.f32 %v663, %v741
    %v768 = vmul.f32 %v664, %v742
    %v769 = vmul.f32 %v665, %v743
    %v770 = vmul.f32 %v666, %v744
    %v771 = vmul.f32 %v667, %v745
    %v772 = vmul.f32 %v668, %v746
    %v773 = vmul.f32 %v669, %v747
    %v774 = vmul.f32 %v670, %v748
    %v775 = vmul.f32 %v671, %v749
    %v776 = vmul.f32 %v672, %v750
    %v777 = vmul.f32 %v673, %v751
    %v778 = vmul.f32 %v674, %v752
    %v779 = vmul.f32 %v675, %v753
    %v780 = vmul.f32 %v676, %v754
    %v781 = vmul.f32 %v677, %v755
    %v782 = vmul.f32 %v678, %v756
    %v783 = vmul.f32 %v679, %v757
    %v784 = vmul.f32 %v680, %v758
    %v785 = vmul.f32 %v681, %v759
    %v786 = vmul.f32 %v682, %v760
    %v787 = vmul.f32 %v683, %v761
    %v788 = vmul.f32 %v684, %v762
    %v789 = vmul.f32 %v685, %v763
    %v790 = vmul.f32 %v686, %v764
    %817 = vrot.lane.b32.xlu0 %v610, 112
    %v818 = vpop.permute.xlu0 %817
    %819 = vrot.lane.b32.xlu0 %v612, 112
    %v820 = vpop.permute.xlu0 %819
    %821 = vrot.lane.b32.xlu0 %v614, 112
    %v822 = vpop.permute.xlu0 %821
    %823 = vrot.lane.b32.xlu0 %v616, 112
    %v824 = vpop.permute.xlu0 %823
    %825 = vrot.lane.b32.xlu0 %v618, 112
    %v826 = vpop.permute.xlu0 %825
    %827 = vrot.lane.b32.xlu0 %v620, 112
    %v828 = vpop.permute.xlu0 %827
    %829 = vrot.lane.b32.xlu0 %v622, 112
    %v830 = vpop.permute.xlu0 %829
    %831 = vrot.lane.b32.xlu0 %v624, 112
    %v832 = vpop.permute.xlu0 %831
    %833 = vrot.lane.b32.xlu0 %v626, 112
    %v834 = vpop.permute.xlu0 %833
    %835 = vrot.lane.b32.xlu0 %v628, 112
    %v836 = vpop.permute.xlu0 %835
    %837 = vrot.lane.b32.xlu0 %v630, 112
    %v838 = vpop.permute.xlu0 %837
    %839 = vrot.lane.b32.xlu0 %v632, 112
    %v840 = vpop.permute.xlu0 %839
    %841 = vrot.lane.b32.xlu0 %v634, 112
    %v842 = vpop.permute.xlu0 %841
    %843 = vrot.lane.b32.xlu0 %v636, 112
    %v844 = vpop.permute.xlu0 %843
    %845 = vrot.lane.b32.xlu0 %v638, 112
    %v846 = vpop.permute.xlu0 %845
    %847 = vrot.lane.b32.xlu0 %v640, 112
    %v848 = vpop.permute.xlu0 %847
    %849 = vrot.lane.b32.xlu0 %v642, 112
    %v850 = vpop.permute.xlu0 %849
    %851 = vrot.lane.b32.xlu0 %v644, 112
    %v852 = vpop.permute.xlu0 %851
    %853 = vrot.lane.b32.xlu0 %v646, 112
    %v854 = vpop.permute.xlu0 %853
    %855 = vrot.lane.b32.xlu0 %v648, 112
    %v856 = vpop.permute.xlu0 %855
    %857 = vrot.lane.b32.xlu0 %v650, 112
    %v858 = vpop.permute.xlu0 %857
    %859 = vrot.lane.b32.xlu0 %v652, 112
    %v860 = vpop.permute.xlu0 %859
    %861 = vrot.lane.b32.xlu0 %v654, 112
    %v862 = vpop.permute.xlu0 %861
    %863 = vrot.lane.b32.xlu0 %v656, 112
    %v864 = vpop.permute.xlu0 %863
    %865 = vrot.lane.b32.xlu0 %v658, 112
    %v866 = vpop.permute.xlu0 %865
    %867 = vrot.lane.b32.xlu0 %v660, 112
    %v868 = vpop.permute.xlu0 %867
    %v895 = vmul.f32 %v765, %v818
    %v896 = vmul.f32 %v766, %v820
    %v897 = vmul.f32 %v767, %v822
    %v898 = vmul.f32 %v768, %v824
    %v899 = vmul.f32 %v769, %v826
    %v900 = vmul.f32 %v770, %v828
    %v901 = vmul.f32 %v771, %v830
    %v902 = vmul.f32 %v772, %v832
    %v903 = vmul.f32 %v773, %v834
    %v904 = vmul.f32 %v774, %v836
    %v905 = vmul.f32 %v775, %v838
    %v906 = vmul.f32 %v776, %v840
    %v907 = vmul.f32 %v777, %v842
    %v908 = vmul.f32 %v778, %v844
    %v909 = vmul.f32 %v779, %v846
    %v910 = vmul.f32 %v780, %v848
    %v911 = vmul.f32 %v781, %v850
    %v912 = vmul.f32 %v782, %v852
    %v913 = vmul.f32 %v783, %v854
    %v914 = vmul.f32 %v784, %v856
    %v915 = vmul.f32 %v785, %v858
    %v916 = vmul.f32 %v786, %v860
    %v917 = vmul.f32 %v787, %v862
    %v918 = vmul.f32 %v788, %v864
    %v919 = vmul.f32 %v789, %v866
    %v920 = vmul.f32 %v790, %v868
    %v921 = vlaneseq
    %v922 = vshrl.u32 %v921, 7
    %v923 = vadd.s32 %v922, 8
    %v924 = vadd.s32 %v922, 16
    %v925 = vadd.s32 %v922, 24
    %v926 = vadd.s32 %v922, 32
    %v927 = vadd.s32 %v922, 40
    %v928 = vadd.s32 %v922, 48
    %v929 = vadd.s32 %v922, 56
    %v930 = vadd.s32 %v922, 64
    %v931 = vadd.s32 %v922, 72
    %v932 = vadd.s32 %v922, 80
    %v933 = vadd.s32 %v922, 88
    %v934 = vadd.s32 %v922, 96
    %v935 = vadd.s32 %v922, 104
    %v936 = vadd.s32 %v922, 112
    %v937 = vadd.s32 %v922, 120
    %v938 = vadd.s32 %v922, 128
    %v939 = vadd.s32 %v922, 136
    %v940 = vadd.s32 %v922, 144
    %v941 = vadd.s32 %v922, 152
    %v942 = vadd.s32 %v922, 160
    %v943 = vadd.s32 %v922, 168
    %v944 = vadd.s32 %v922, 176
    %v945 = vadd.s32 %v922, 184
    %v946 = vadd.s32 %v922, 192
    %v947 = vadd.s32 %v922, 200
    %s948 = smul.u32 0, 208
    %v949 = vstv %s948
    %v950 = vadd.s32 %v922, %v949
    %v951 = vadd.s32 %v923, %v949
    %v952 = vadd.s32 %v924, %v949
    %v953 = vadd.s32 %v925, %v949
    %v954 = vadd.s32 %v926, %v949
    %v955 = vadd.s32 %v927, %v949
    %v956 = vadd.s32 %v928, %v949
    %v957 = vadd.s32 %v929, %v949
    %v958 = vadd.s32 %v930, %v949
    %v959 = vadd.s32 %v931, %v949
    %v960 = vadd.s32 %v932, %v949
    %v961 = vadd.s32 %v933, %v949
    %v962 = vadd.s32 %v934, %v949
    %v963 = vadd.s32 %v935, %v949
    %v964 = vadd.s32 %v936, %v949
    %v965 = vadd.s32 %v937, %v949
    %v966 = vadd.s32 %v938, %v949
    %v967 = vadd.s32 %v939, %v949
    %v968 = vadd.s32 %v940, %v949
    %v969 = vadd.s32 %v941, %v949
    %v970 = vadd.s32 %v942, %v949
    %v971 = vadd.s32 %v943, %v949
    %v972 = vadd.s32 %v944, %v949
    %v973 = vadd.s32 %v945, %v949
    %v974 = vadd.s32 %v946, %v949
    %v975 = vadd.s32 %v947, %v949
    %vm976 = vcmp.lt.s32.totalorder %v950, 200
    %vm977 = vcmp.lt.s32.totalorder %v951, 200
    %vm978 = vcmp.lt.s32.totalorder %v952, 200
    %vm979 = vcmp.lt.s32.totalorder %v953, 200
    %vm980 = vcmp.lt.s32.totalorder %v954, 200
    %vm981 = vcmp.lt.s32.totalorder %v955, 200
    %vm982 = vcmp.lt.s32.totalorder %v956, 200
    %vm983 = vcmp.lt.s32.totalorder %v957, 200
    %vm984 = vcmp.lt.s32.totalorder %v958, 200
    %vm985 = vcmp.lt.s32.totalorder %v959, 200
    %vm986 = vcmp.lt.s32.totalorder %v960, 200
    %vm987 = vcmp.lt.s32.totalorder %v961, 200
    %vm988 = vcmp.lt.s32.totalorder %v962, 200
    %vm989 = vcmp.lt.s32.totalorder %v963, 200
    %vm990 = vcmp.lt.s32.totalorder %v964, 200
    %vm991 = vcmp.lt.s32.totalorder %v965, 200
    %vm992 = vcmp.lt.s32.totalorder %v966, 200
    %vm993 = vcmp.lt.s32.totalorder %v967, 200
    %vm994 = vcmp.lt.s32.totalorder %v968, 200
    %vm995 = vcmp.lt.s32.totalorder %v969, 200
    %vm996 = vcmp.lt.s32.totalorder %v970, 200
    %vm997 = vcmp.lt.s32.totalorder %v971, 200
    %vm998 = vcmp.lt.s32.totalorder %v972, 200
    %vm999 = vcmp.lt.s32.totalorder %v973, 200
    %vm1000 = vcmp.lt.s32.totalorder %v974, 200
    %vm1001 = vcmp.lt.s32.totalorder %v975, 200
    %v1002 = vsel %vm976, 1, 0
    %v1003 = vsel %vm977, 1, 0
    %v1004 = vsel %vm978, 1, 0
    %v1005 = vsel %vm979, 1, 0
    %v1006 = vsel %vm980, 1, 0
    %v1007 = vsel %vm981, 1, 0
    %v1008 = vsel %vm982, 1, 0
    %v1009 = vsel %vm983, 1, 0
    %v1010 = vsel %vm984, 1, 0
    %v1011 = vsel %vm985, 1, 0
    %v1012 = vsel %vm986, 1, 0
    %v1013 = vsel %vm987, 1, 0
    %v1014 = vsel %vm988, 1, 0
    %v1015 = vsel %vm989, 1, 0
    %v1016 = vsel %vm990, 1, 0
    %v1017 = vsel %vm991, 1, 0
    %v1018 = vsel %vm992, 1, 0
    %v1019 = vsel %vm993, 1, 0
    %v1020 = vsel %vm994, 1, 0
    %v1021 = vsel %vm995, 1, 0
    %v1022 = vsel %vm996, 1, 0
    %v1023 = vsel %vm997, 1, 0
    %v1024 = vsel %vm998, 1, 0
    %v1025 = vsel %vm999, 1, 0
    %v1026 = vsel %vm1000, 1, 0
    %v1027 = vsel %vm1001, 1, 0
    %vm1028 = vcmp.eq.s32.totalorder %v1002, 1
    %vm1029 = vcmp.eq.s32.totalorder %v1003, 1
    %vm1030 = vcmp.eq.s32.totalorder %v1004, 1
    %vm1031 = vcmp.eq.s32.totalorder %v1005, 1
    %vm1032 = vcmp.eq.s32.totalorder %v1006, 1
    %vm1033 = vcmp.eq.s32.totalorder %v1007, 1
    %vm1034 = vcmp.eq.s32.totalorder %v1008, 1
    %vm1035 = vcmp.eq.s32.totalorder %v1009, 1
    %vm1036 = vcmp.eq.s32.totalorder %v1010, 1
    %vm1037 = vcmp.eq.s32.totalorder %v1011, 1
    %vm1038 = vcmp.eq.s32.totalorder %v1012, 1
    %vm1039 = vcmp.eq.s32.totalorder %v1013, 1
    %vm1040 = vcmp.eq.s32.totalorder %v1014, 1
    %vm1041 = vcmp.eq.s32.totalorder %v1015, 1
    %vm1042 = vcmp.eq.s32.totalorder %v1016, 1
    %vm1043 = vcmp.eq.s32.totalorder %v1017, 1
    %vm1044 = vcmp.eq.s32.totalorder %v1018, 1
    %vm1045 = vcmp.eq.s32.totalorder %v1019, 1
    %vm1046 = vcmp.eq.s32.totalorder %v1020, 1
    %vm1047 = vcmp.eq.s32.totalorder %v1021, 1
    %vm1048 = vcmp.eq.s32.totalorder %v1022, 1
    %vm1049 = vcmp.eq.s32.totalorder %v1023, 1
    %vm1050 = vcmp.eq.s32.totalorder %v1024, 1
    %vm1051 = vcmp.eq.s32.totalorder %v1025, 1
    %vm1052 = vcmp.eq.s32.totalorder %v1026, 1
    %vm1053 = vcmp.eq.s32.totalorder %v1027, 1
    %v1054 = vsel %vm1028, %v895, 0.0
    %v1055 = vsel %vm1029, %v896, 0.0
    %v1056 = vsel %vm1030, %v897, 0.0
    %v1057 = vsel %vm1031, %v898, 0.0
    %v1058 = vsel %vm1032, %v899, 0.0
    %v1059 = vsel %vm1033, %v900, 0.0
    %v1060 = vsel %vm1034, %v901, 0.0
    %v1061 = vsel %vm1035, %v902, 0.0
    %v1062 = vsel %vm1036, %v903, 0.0
    %v1063 = vsel %vm1037, %v904, 0.0
    %v1064 = vsel %vm1038, %v905, 0.0
    %v1065 = vsel %vm1039, %v906, 0.0
    %v1066 = vsel %vm1040, %v907, 0.0
    %v1067 = vsel %vm1041, %v908, 0.0
    %v1068 = vsel %vm1042, %v909, 0.0
    %v1069 = vsel %vm1043, %v910, 0.0
    %v1070 = vsel %vm1044, %v911, 0.0
    %v1071 = vsel %vm1045, %v912, 0.0
    %v1072 = vsel %vm1046, %v913, 0.0
    %v1073 = vsel %vm1047, %v914, 0.0
    %v1074 = vsel %vm1048, %v915, 0.0
    %v1075 = vsel %vm1049, %v916, 0.0
    %v1076 = vsel %vm1050, %v917, 0.0
    %v1077 = vsel %vm1051, %v918, 0.0
    %v1078 = vsel %vm1052, %v919, 0.0
    %v1079 = vsel %vm1053, %v920, 0.0
    %vm1080 = vcmask 130048
    %v1081 = vsel %vm1080, %v1054, 0.0
    %v1082 = vsel %vm1080, %v1055, 0.0
    %v1083 = vadd.f32 %v1081, %v1082
    %v1084 = vsel %vm1080, %v1056, 0.0
    %v1085 = vadd.f32 %v1083, %v1084
    %v1086 = vsel %vm1080, %v1057, 0.0
    %v1087 = vadd.f32 %v1085, %v1086
    %v1088 = vsel %vm1080, %v1058, 0.0
    %v1089 = vadd.f32 %v1087, %v1088
    %v1090 = vsel %vm1080, %v1059, 0.0
    %v1091 = vadd.f32 %v1089, %v1090
    %v1092 = vsel %vm1080, %v1060, 0.0
    %v1093 = vadd.f32 %v1091, %v1092
    %v1094 = vsel %vm1080, %v1061, 0.0
    %v1095 = vadd.f32 %v1093, %v1094
    %v1096 = vsel %vm1080, %v1062, 0.0
    %v1097 = vadd.f32 %v1095, %v1096
    %v1098 = vsel %vm1080, %v1063, 0.0
    %v1099 = vadd.f32 %v1097, %v1098
    %v1100 = vsel %vm1080, %v1064, 0.0
    %v1101 = vadd.f32 %v1099, %v1100
    %v1102 = vsel %vm1080, %v1065, 0.0
    %v1103 = vadd.f32 %v1101, %v1102
    %v1104 = vsel %vm1080, %v1066, 0.0
    %v1105 = vadd.f32 %v1103, %v1104
    %v1106 = vsel %vm1080, %v1067, 0.0
    %v1107 = vadd.f32 %v1105, %v1106
    %v1108 = vsel %vm1080, %v1068, 0.0
    %v1109 = vadd.f32 %v1107, %v1108
    %v1110 = vsel %vm1080, %v1069, 0.0
    %v1111 = vadd.f32 %v1109, %v1110
    %v1112 = vsel %vm1080, %v1070, 0.0
    %v1113 = vadd.f32 %v1111, %v1112
    %v1114 = vsel %vm1080, %v1071, 0.0
    %v1115 = vadd.f32 %v1113, %v1114
    %v1116 = vsel %vm1080, %v1072, 0.0
    %v1117 = vadd.f32 %v1115, %v1116
    %v1118 = vsel %vm1080, %v1073, 0.0
    %v1119 = vadd.f32 %v1117, %v1118
    %v1120 = vsel %vm1080, %v1074, 0.0
    %v1121 = vadd.f32 %v1119, %v1120
    %v1122 = vsel %vm1080, %v1075, 0.0
    %v1123 = vadd.f32 %v1121, %v1122
    %v1124 = vsel %vm1080, %v1076, 0.0
    %v1125 = vadd.f32 %v1123, %v1124
    %v1126 = vsel %vm1080, %v1077, 0.0
    %v1127 = vadd.f32 %v1125, %v1126
    %v1128 = vsel %vm1080, %v1078, 0.0
    %v1129 = vadd.f32 %v1127, %v1128
    %v1130 = vsel %vm1080, %v1079, 0.0
    %v1131 = vadd.f32 %v1129, %v1130
    %v1132 = vrot.slane %v1131, 4
    %v1133 = vadd.f32 %v1131, %v1132
    %v1134 = vrot.slane %v1133, 2
    %v1135 = vadd.f32 %v1133, %v1134
    %v1136 = vrot.slane %v1135, 1
    %v1137 = vadd.f32 %v1135, %v1136
    %vm1138 = vcmask 122880
    %1139 = vst.msk [vmem:[#allocation2] sm:$0x1] %vm1138, %v1137
    // Predicated region
    $region30: #{tpu_custom_call.1} parent=1 // pred_check
      _
    $region31: #{tpu_custom_call.1} parent=1 // pred_check_branch
      %1141 = sbr.rel (0) target = $region33
    $region32: #{tpu_custom_call.1} parent=1 // pred_region
      %s1143 = ssub.s32 128, 128
      %1144 = vsyncadd [#allocation3], %s1143
      %s1146 = sshll.u32 [#allocation2], 4
      %s1147 = int_to_ptr.vmem [resolvable:$true] %s1146
      %1149 = dma.vmem_to_hbm [thread:$0]  %s1147, 128, %s7, [#allocation3]
    $region33: #{tpu_custom_call.1} parent=1 // pred_fallthru
      _
    // Predicated region
    $region34: #{tpu_custom_call.1} parent=1 // pred_check
      _
    $region35: #{tpu_custom_call.1} parent=1 // pred_check_branch
      %1151 = sbr.rel (0) target = $region37
    $region36: #{tpu_custom_call.1} parent=1 // pred_region
      %1152 = dma.done [#allocation3], 128
    $region37: #{tpu_custom_call.1} parent=1 // pred_fallthru
      _
    %1153 = vsyncpa [#allocation3], 1

</llo_original>
